<compile_context>
chip_gen: v6e
topology: v6e:2x2x1
jax: 0.10.0
libtpu: 0.0.40
codegen_flags: <defaults>
</compile_context>

<pallas_src>
import functools

import jax
import jax.numpy as jnp
from jax.experimental import pallas as pl
from jax.experimental.pallas import tpu as pltpu

HIDDEN = 128
DROP_P = 0.6
INV_KEEP = 1.0 / (1.0 - DROP_P)
A_PAD = 128        # lane-dense padded action dimension
SUBLANE = 8


def _round_up(n, m):
    return ((n + m - 1) // m) * m


def policy_kernel(x_ref, w1t_ref, w2t_ref, u_ref, o_ref, *, action_size):
    # ---- l1: (B, obs_pad) @ (obs_pad, 128) -> (B, 128) on the MXU ----
    h = jnp.dot(x_ref[...], w1t_ref[...], preferred_element_type=jnp.float32)

    # ---- Dropout(p=0.6, train mode, inverted) fused with ReLU ----
    # keep with prob (1 - p); survivors scaled by 1/(1-p). Since the scale is
    # positive, dropout-then-relu == single select on (keep & h>0).
    keep = u_ref[...] >= DROP_P
    h = jnp.where(keep & (h > 0.0), h * INV_KEEP, 0.0)

    # ---- l2: (B, 128) @ (128, 128) -> (B, 128) lane-dense padded logits ----
    logits = jnp.dot(h, w2t_ref[...], preferred_element_type=jnp.float32)

    # ---- Softmax over the real action lanes only ----
    lane = jax.lax.broadcasted_iota(jnp.int32, logits.shape, dimension=1)
    logits = jnp.where(lane < action_size, logits, -jnp.inf)  # exp(-inf) = 0
    m = jnp.max(logits, axis=-1, keepdims=True)
    e = jnp.exp(logits - m)
    denom = jnp.sum(e, axis=-1, keepdims=True)
    o_ref[...] = e / denom


def init_params(key, obs_size, action_size):
    """Deterministic init mimicking nn.Linear default (uniform +/- 1/sqrt(fan_in))."""
    k1, k2 = jax.random.split(key)
    b1 = 1.0 / jnp.sqrt(jnp.float32(obs_size))
    b2 = 1.0 / jnp.sqrt(jnp.float32(HIDDEN))
    w1 = jax.random.uniform(k1, (HIDDEN, obs_size), jnp.float32, -b1, b1)      # l1.weight
    w2 = jax.random.uniform(k2, (action_size, HIDDEN), jnp.float32, -b2, b2)   # l2.weight
    return w1, w2


def prepare_weights(w1, w2):
    """One-time layout prep (do this at init, NOT per forward call):
       - pre-transpose so the kernel uses plain jnp.dot (no in-kernel transpose,
         no per-call XLA transpose ops),
       - pad the obs contraction dim to a multiple of 8 sublanes,
       - zero-pad the action dim to 128 lanes for a lane-dense output store."""
    obs_size = w1.shape[1]
    action_size = w2.shape[0]
    obs_pad = _round_up(obs_size, SUBLANE)

    w1t = w1.T                                              # (obs, 128)
    if obs_pad != obs_size:
        w1t = jnp.pad(w1t, ((0, obs_pad - obs_size), (0, 0)))

    w2t = jnp.pad(w2.T, ((0, 0), (0, A_PAD - action_size)))  # (128, 128)
    return w1t, w2t


def policy_forward(x, w1t, w2t_pad, action_size, dropout_key):
    """x: (B, obs) f32; w1t: (obs_pad, 128) f32; w2t_pad: (128, 128) f32."""
    B, obs_size = x.shape
    obs_pad = w1t.shape[0]
    if obs_pad != obs_size:
        x = jnp.pad(x, ((0, 0), (0, obs_pad - obs_size)))

    # Dropout randomness generated host-side for portability (in-kernel TPU PRNG
    # has no interpret/CPU lowering); threshold compare happens in the kernel.
    u = jax.random.uniform(dropout_key, (B, HIDDEN), dtype=jnp.float32)

    kernel = functools.partial(policy_kernel, action_size=action_size)
    probs_padded = pl.pallas_call(
        kernel,
        out_shape=jax.ShapeDtypeStruct((B, A_PAD), jnp.float32),
        in_specs=[
            pl.BlockSpec(memory_space=pltpu.MemorySpace.VMEM),  # x
            pl.BlockSpec(memory_space=pltpu.MemorySpace.VMEM),  # W1^T (padded obs)
            pl.BlockSpec(memory_space=pltpu.MemorySpace.VMEM),  # W2^T (padded A)
            pl.BlockSpec(memory_space=pltpu.MemorySpace.VMEM),  # dropout uniforms
        ],
        out_specs=pl.BlockSpec(memory_space=pltpu.MemorySpace.VMEM),
    )(x, w1t, w2t_pad, u)

    return probs_padded[:, :action_size]


if __name__ == "__main__":
    key = jax.random.PRNGKey(0)
    k_x, k_p, k_drop = jax.random.split(key, 3)

    batch = 8
    obs_size = 16       # observation_space_size
    action_size = 4     # action_space_size

    x = jax.random.normal(k_x, (batch, obs_size), dtype=jnp.float32)
    w1, w2 = init_params(k_p, obs_size, action_size)
    w1t, w2t_pad = prepare_weights(w1, w2)   # one-time layout prep

    probs = policy_forward(x, w1t, w2t_pad, action_size, k_drop)
    probs = jax.block_until_ready(probs)

    # sanity: rows are valid probability distributions
    assert probs.shape == (batch, action_size)
    assert bool(jnp.all(jnp.isfinite(probs)))
    assert bool(jnp.all(probs >= 0.0))
    assert bool(jnp.allclose(jnp.sum(probs, axis=-1), 1.0, atol=1e-5))

    print("KERNEL_OK")
</pallas_src>

<mosaic_0001>
module attributes {stable_mosaic.version = 11 : i64} {
  func.func @policy_kernel(%arg0: memref<8x16xf32, #tpu.memory_space<vmem>>, %arg1: memref<16x128xf32, #tpu.memory_space<vmem>>, %arg2: memref<128x128xf32, #tpu.memory_space<vmem>>, %arg3: memref<8x128xf32, #tpu.memory_space<vmem>>, %arg4: memref<8x128xf32, #tpu.memory_space<vmem>>) attributes {dimension_semantics = [], scalar_prefetch = 0 : i64, scratch_operands = 0 : i64, tpu.core_type = #tpu.core_type<tc>} {
    %c0 = arith.constant 0 : index
    %c0_0 = arith.constant 0 : index
    %0 = vector.load %arg0[%c0, %c0_0] : memref<8x16xf32, #tpu.memory_space<vmem>>, vector<8x16xf32>
    %c0_1 = arith.constant 0 : index
    %c0_2 = arith.constant 0 : index
    %1 = vector.load %arg1[%c0_1, %c0_2] : memref<16x128xf32, #tpu.memory_space<vmem>>, vector<16x128xf32>
    %cst = arith.constant dense<0.000000e+00> : vector<8x128xf32>
    %2 = tpu.matmul %0, %1, %cst {dimension_numbers = #tpu.dot_dimension_numbers<[1], [0], [0], [1], [0, 0, 1, 1], [], []>} : vector<8x16xf32>, vector<16x128xf32>, vector<8x128xf32> -> vector<8x128xf32>
    %c0_3 = arith.constant 0 : index
    %c0_4 = arith.constant 0 : index
    %3 = vector.load %arg3[%c0_3, %c0_4] : memref<8x128xf32, #tpu.memory_space<vmem>>, vector<8x128xf32>
    %cst_5 = arith.constant 6.000000e-01 : f32
    %4 = vector.broadcast %cst_5 : f32 to vector<8x128xf32>
    %5 = arith.cmpf oge, %3, %4 : vector<8x128xf32>
    %cst_6 = arith.constant 0.000000e+00 : f32
    %6 = vector.broadcast %cst_6 : f32 to vector<8x128xf32>
    %7 = arith.cmpf ogt, %2, %6 : vector<8x128xf32>
    %8 = arith.andi %5, %7 : vector<8x128xi1>
    %cst_7 = arith.constant 2.500000e+00 : f32
    %9 = vector.broadcast %cst_7 : f32 to vector<8x128xf32>
    %10 = arith.mulf %2, %9 : vector<8x128xf32>
    %cst_8 = arith.constant 0.000000e+00 : f32
    %11 = vector.broadcast %cst_8 : f32 to vector<8x128xf32>
    %12 = arith.select %8, %10, %11 : vector<8x128xi1>, vector<8x128xf32>
    %c0_9 = arith.constant 0 : index
    %c0_10 = arith.constant 0 : index
    %13 = vector.load %arg2[%c0_9, %c0_10] : memref<128x128xf32, #tpu.memory_space<vmem>>, vector<128x128xf32>
    %cst_11 = arith.constant dense<0.000000e+00> : vector<8x128xf32>
    %14 = tpu.matmul %12, %13, %cst_11 {dimension_numbers = #tpu.dot_dimension_numbers<[1], [0], [0], [1], [0, 0, 1, 1], [], []>} : vector<8x128xf32>, vector<128x128xf32>, vector<8x128xf32> -> vector<8x128xf32>
    %15 = tpu.iota {dimensions = array<i32: 1>} : vector<8x128xi32>
    %c4_i32 = arith.constant 4 : i32
    %16 = vector.broadcast %c4_i32 : i32 to vector<8x128xi32>
    %17 = arith.cmpi slt, %15, %16 : vector<8x128xi32>
    %cst_12 = arith.constant 0xFF800000 : f32
    %18 = vector.broadcast %cst_12 : f32 to vector<8x128xf32>
    %19 = arith.select %17, %14, %18 : vector<8x128xi1>, vector<8x128xf32>
    %cst_13 = arith.constant dense<0xFF800000> : vector<8xf32>
    %20 = vector.multi_reduction <maximumf>, %19, %cst_13 [1] : vector<8x128xf32> to vector<8xf32>
    %21 = vector.shape_cast %20 : vector<8xf32> to vector<8x1xf32>
    %22 = vector.broadcast %21 : vector<8x1xf32> to vector<8x128xf32>
    %23 = arith.subf %19, %22 : vector<8x128xf32>
    %24 = math.exp %23 : vector<8x128xf32>
    %cst_14 = arith.constant dense<0.000000e+00> : vector<8xf32>
    %25 = vector.multi_reduction <add>, %24, %cst_14 [1] : vector<8x128xf32> to vector<8xf32>
    %26 = vector.shape_cast %25 : vector<8xf32> to vector<8x1xf32>
    %27 = vector.broadcast %26 : vector<8x1xf32> to vector<8x128xf32>
    %28 = arith.divf %24, %27 : vector<8x128xf32>
    %c0_15 = arith.constant 0 : index
    %c0_16 = arith.constant 0 : index
    %29 = vector.load %arg4[%c0_15, %c0_16] : memref<8x128xf32, #tpu.memory_space<vmem>>, vector<8x128xf32>
    tpu.vector_store %arg4[%c0_15, %c0_16], %28 {strides = array<i32>} : memref<8x128xf32, #tpu.memory_space<vmem>>, vector<8x128xf32>,
    return
  }
}

</mosaic_0001>

<llo_original>
// kernel: tpu_custom_call.1
$region0: #{tpu_custom_call.1}
  #allocation0 [shape = 'u32[]', space=smem, size = 0x4, offset = 0x4, fixed_abs, tag = 'smem constant byte address 0x4 - core index']
  #allocation1 [shape = 'u32[144,128]{1,0:T(1,128)}', space=vmem, size = 0x12000, scoped, tag = 'internal scratch']
  %s0 = inlined_call_operand.hbm [shape: f32[8,16], index: 0, kind: input, shape index: {}]
  %s1 = inlined_call_operand.hbm [shape: f32[16,128], index: 1, kind: input, shape index: {}]
  %s2 = inlined_call_operand.hbm [shape: f32[128,128], index: 2, kind: input, shape index: {}]
  %s3 = inlined_call_operand.hbm [shape: f32[8,128], index: 3, kind: input, shape index: {}]
  %s4 = inlined_call_operand.hbm [shape: f32[8,128], index: 4, kind: output, shape index: {}]
  %s5 = sld [smem:[#allocation0]]
  $region42: #{tpu_custom_call.1} parent=0
    _
  %s7 = ssub.s32 1, %s5
  %s8 = scalar_select 0, %s7, %s5
  $region1: #{tpu_custom_call.1} parent=0
    #allocation2 [shape = 'u8[4096]{0}', space=vmem, size = 0x1000, scoped, tag = 'input window, operand 0, single buffered']
    #allocation3 [shape = 's32[1]{0}', space=sflag, size = 0x4, scoped, tag = 'scoped memory for tpu_custom_call.1']
    #allocation4 [shape = 's32[1]{0}', space=sflag, size = 0x4, scoped, tag = 'scoped memory for tpu_custom_call.1']
    #allocation5 [shape = 'u8[8192]{0}', space=vmem, size = 0x2000, scoped, tag = 'input window, operand 1, single buffered']
    #allocation6 [shape = 's32[1]{0}', space=sflag, size = 0x4, scoped, tag = 'scoped memory for tpu_custom_call.1']
    #allocation7 [shape = 'u8[65536]{0}', space=vmem, size = 0x10000, scoped, tag = 'input window, operand 2, single buffered']
    #allocation8 [shape = 'u8[4096]{0}', space=vmem, size = 0x1000, scoped, tag = 'input window, operand 3, single buffered']
    #allocation9 [shape = 's32[1]{0}', space=sflag, size = 0x4, scoped, tag = 'scoped memory for tpu_custom_call.1']
    #allocation10 [shape = 'u8[4096]{0}', space=vmem, size = 0x1000, scoped, tag = 'output window, operand 0, single buffered']
    %9 = vsyncpa [#allocation3], 0
    %10 = vsyncpa [#allocation6], 0
    %11 = vsyncpa [#allocation9], 0
    %12 = vsyncpa [#allocation4], 0
    // Predicated region
    $region2: #{tpu_custom_call.1} parent=1 // pred_check
      _
    $region3: #{tpu_custom_call.1} parent=1 // pred_check_branch
      %14 = sbr.rel (0) target = $region5
    $region4: #{tpu_custom_call.1} parent=1 // pred_region
      %s16 = ssub.s32 128, 128
      %17 = vsyncadd [#allocation3], %s16
      %s19 = sshll.u32 [#allocation2], 4
      %s20 = int_to_ptr.vmem [resolvable:$true] %s19
      %22 = dma.hbm_to_vmem [thread:$0]  %s0, 128, %s20, [#allocation3]
    $region5: #{tpu_custom_call.1} parent=1 // pred_fallthru
      _
    // Predicated region
    $region6: #{tpu_custom_call.1} parent=1 // pred_check
      _
    $region7: #{tpu_custom_call.1} parent=1 // pred_check_branch
      %24 = sbr.rel (0) target = $region9
    $region8: #{tpu_custom_call.1} parent=1 // pred_region
      %s26 = ssub.s32 256, 256
      %27 = vsyncadd [#allocation6], %s26
      %s28 = sshll.u32 [#allocation5], 4
      %s29 = int_to_ptr.vmem [resolvable:$true] %s28
      %34 = dma.hbm_to_vmem [thread:$0]  %s1, 256, %s29, [#allocation6], 128, 128, 8
    $region9: #{tpu_custom_call.1} parent=1 // pred_fallthru
      _
    // Predicated region
    $region10: #{tpu_custom_call.1} parent=1 // pred_check
      _
    $region11: #{tpu_custom_call.1} parent=1 // pred_check_branch
      %36 = sbr.rel (0) target = $region13
    $region12: #{tpu_custom_call.1} parent=1 // pred_region
      %s38 = ssub.s32 2048, 2048
      %39 = vsyncadd [#allocation6], %s38
      %s40 = sshll.u32 [#allocation7], 4
      %s41 = int_to_ptr.vmem [resolvable:$true] %s40
      %46 = dma.hbm_to_vmem [thread:$0]  %s2, 2048, %s41, [#allocation6], 128, 128, 8
    $region13: #{tpu_custom_call.1} parent=1 // pred_fallthru
      _
    // Predicated region
    $region14: #{tpu_custom_call.1} parent=1 // pred_check
      _
    $region15: #{tpu_custom_call.1} parent=1 // pred_check_branch
      %48 = sbr.rel (0) target = $region17
    $region16: #{tpu_custom_call.1} parent=1 // pred_region
      %s50 = ssub.s32 128, 128
      %51 = vsyncadd [#allocation9], %s50
      %s53 = sshll.u32 [#allocation8], 4
      %s54 = int_to_ptr.vmem [resolvable:$true] %s53
      %56 = dma.hbm_to_vmem [thread:$0]  %s3, 128, %s54, [#allocation9]
    $region17: #{tpu_custom_call.1} parent=1 // pred_fallthru
      _
    // Predicated region
    $region18: #{tpu_custom_call.1} parent=1 // pred_check
      _
    $region19: #{tpu_custom_call.1} parent=1 // pred_check_branch
      %58 = sbr.rel (0) target = $region21
    $region20: #{tpu_custom_call.1} parent=1 // pred_region
      %59 = dma.done [#allocation3], 128
    $region21: #{tpu_custom_call.1} parent=1 // pred_fallthru
      _
    // Predicated region
    $region22: #{tpu_custom_call.1} parent=1 // pred_check
      _
    $region23: #{tpu_custom_call.1} parent=1 // pred_check_branch
      %61 = sbr.rel (0) target = $region25
    $region24: #{tpu_custom_call.1} parent=1 // pred_region
      %62 = dma.done [#allocation6], 256
    $region25: #{tpu_custom_call.1} parent=1 // pred_fallthru
      _
    // Predicated region
    $region26: #{tpu_custom_call.1} parent=1 // pred_check
      _
    $region27: #{tpu_custom_call.1} parent=1 // pred_check_branch
      %64 = sbr.rel (0) target = $region29
    $region28: #{tpu_custom_call.1} parent=1 // pred_region
      %65 = dma.done [#allocation6], 2048
    $region29: #{tpu_custom_call.1} parent=1 // pred_fallthru
      _
    // Predicated region
    $region30: #{tpu_custom_call.1} parent=1 // pred_check
      _
    $region31: #{tpu_custom_call.1} parent=1 // pred_check_branch
      %67 = sbr.rel (0) target = $region33
    $region32: #{tpu_custom_call.1} parent=1 // pred_region
      %68 = dma.done [#allocation9], 128
    $region33: #{tpu_custom_call.1} parent=1 // pred_fallthru
      _
    %v69 = vld [vmem:[#allocation2] sm:$0xff]
    %v70 = vld [vmem:[#allocation5] sm:$0xff]
    %v71 = vld [vmem:[#allocation5 + $0x8] sm:$0xff]
    %vm72 = vcmask 130048
    %v74 = vsel %vm72, %v69, 0
    %76 = vmatprep.subr.mxu0 0.0
    %77 = vmatpush1.msra.mxu0 0.0
    %78 = vmatprep.subr.mxu0 0.0
    %79 = vmatpush1.msra.mxu0 0.0
    %80 = vmatprep.subr.mxu0 0.0
    %81 = vmatpush1.msra.mxu0 0.0
    %82 = vmatprep.subr.mxu0 0.0
    %83 = vmatpush1.msra.mxu0 0.0
    %84 = vmatprep.subr.mxu0 0.0
    %85 = vmatpush1.msra.mxu0 0.0
    %86 = vmatprep.subr.mxu0 0.0
    %87 = vmatpush1.msra.mxu0 0.0
    %88 = vmatprep.subr.mxu0 0.0
    %89 = vmatpush1.msra.mxu0 0.0
    %90 = vmatprep.subr.mxu0 0.0
    %91 = vmatpush1.msra.mxu0 0.0
    %92 = vmatprep.subr.mxu0 0.0
    %93 = vmatpush1.msra.mxu0 0.0
    %94 = vmatprep.subr.mxu0 0.0
    %95 = vmatpush1.msra.mxu0 0.0
    %96 = vmatprep.subr.mxu0 0.0
    %97 = vmatpush1.msra.mxu0 0.0
    %98 = vmatprep.subr.mxu0 0.0
    %99 = vmatpush1.msra.mxu0 0.0
    %100 = vmatprep.subr.mxu0 0.0
    %101 = vmatpush1.msra.mxu0 0.0
    %102 = vmatprep.subr.mxu0 0.0
    %103 = vmatpush1.msra.mxu0 0.0
    %104 = vmatprep.subr.mxu0 0.0
    %105 = vmatpush1.msra.mxu0 %v71
    %106 = vmatprep.subr.mxu0 0.0
    %107 = vmatpush1.msra.mxu0 %v70
    %108 = vmatprep.subr.mxu0 0.0
    %109 = vmatpush2.msra.mxu0 0.0
    %110 = vmatprep.subr.mxu0 0.0
    %111 = vmatpush2.msra.mxu0 0.0
    %112 = vmatprep.subr.mxu0 0.0
    %113 = vmatpush2.msra.mxu0 0.0
    %114 = vmatprep.subr.mxu0 0.0
    %115 = vmatpush2.msra.mxu0 0.0
    %116 = vmatprep.subr.mxu0 0.0
    %117 = vmatpush2.msra.mxu0 0.0
    %118 = vmatprep.subr.mxu0 0.0
    %119 = vmatpush2.msra.mxu0 0.0
    %120 = vmatprep.subr.mxu0 0.0
    %121 = vmatpush2.msra.mxu0 0.0
    %122 = vmatprep.subr.mxu0 0.0
    %123 = vmatpush2.msra.mxu0 0.0
    %124 = vmatprep.subr.mxu0 0.0
    %125 = vmatpush2.msra.mxu0 0.0
    %126 = vmatprep.subr.mxu0 0.0
    %127 = vmatpush2.msra.mxu0 0.0
    %128 = vmatprep.subr.mxu0 0.0
    %129 = vmatpush2.msra.mxu0 0.0
    %130 = vmatprep.subr.mxu0 0.0
    %131 = vmatpush2.msra.mxu0 0.0
    %132 = vmatprep.subr.mxu0 0.0
    %133 = vmatpush2.msra.mxu0 0.0
    %134 = vmatprep.subr.mxu0 0.0
    %135 = vmatpush2.msra.mxu0 0.0
    %136 = vmatprep.subr.mxu0 0.0
    %137 = vmatpush2.msra.mxu0 0.0
    %138 = vmatprep.subr.mxu0 0.0
    %139 = vmatpush2.msra.mxu0 0.0
    %140 = vmatprep.mubr.f32.mxu0 0.0
    %141 = vmatmul.mubr.f32.gmra.mxu0 %v74
    %v142 = vpop.f32.mrf.mxu0
    %v143 = vadd.f32 0.0, %v142
    %v144 = vpop.f32.mrf.mxu0
    %145 = vdwg.mxu0
    %v146 = vld [vmem:[#allocation8] sm:$0xff]
    %vm147 = vcmp.ge.f32.partialorder %v146, 0.6
    %vm148 = vcmp.gt.f32.partialorder %v143, 0.0
    %vm149 = vmand %vm147, %vm148
    %v150 = vmul.f32 %v143, 2.5
    %v151 = vsel %vm149, %v150, 0.0
    %v152 = vld [vmem:[#allocation7] sm:$0xff]
    %v153 = vld [vmem:[#allocation7 + $0x8] sm:$0xff]
    %v154 = vld [vmem:[#allocation7 + $0x10] sm:$0xff]
    %v155 = vld [vmem:[#allocation7 + $0x18] sm:$0xff]
    %v156 = vld [vmem:[#allocation7 + $0x20] sm:$0xff]
    %v157 = vld [vmem:[#allocation7 + $0x28] sm:$0xff]
    %v158 = vld [vmem:[#allocation7 + $0x30] sm:$0xff]
    %v159 = vld [vmem:[#allocation7 + $0x38] sm:$0xff]
    %v160 = vld [vmem:[#allocation7 + $0x40] sm:$0xff]
    %v161 = vld [vmem:[#allocation7 + $0x48] sm:$0xff]
    %v162 = vld [vmem:[#allocation7 + $0x50] sm:$0xff]
    %v163 = vld [vmem:[#allocation7 + $0x58] sm:$0xff]
    %v164 = vld [vmem:[#allocation7 + $0x60] sm:$0xff]
    %v165 = vld [vmem:[#allocation7 + $0x68] sm:$0xff]
    %v166 = vld [vmem:[#allocation7 + $0x70] sm:$0xff]
    %v167 = vld [vmem:[#allocation7 + $0x78] sm:$0xff]
    %168 = vmatprep.subr.mxu0 0.0
    %169 = vmatpush1.msra.mxu0 %v167
    %170 = vmatprep.subr.mxu0 0.0
    %171 = vmatpush1.msra.mxu0 %v166
    %172 = vmatprep.subr.mxu0 0.0
    %173 = vmatpush1.msra.mxu0 %v165
    %174 = vmatprep.subr.mxu0 0.0
    %175 = vmatpush1.msra.mxu0 %v164
    %176 = vmatprep.subr.mxu0 0.0
    %177 = vmatpush1.msra.mxu0 %v163
    %178 = vmatprep.subr.mxu0 0.0
    %179 = vmatpush1.msra.mxu0 %v162
    %180 = vmatprep.subr.mxu0 0.0
    %181 = vmatpush1.msra.mxu0 %v161
    %182 = vmatprep.subr.mxu0 0.0
    %183 = vmatpush1.msra.mxu0 %v160
    %184 = vmatprep.subr.mxu0 0.0
    %185 = vmatpush1.msra.mxu0 %v159
    %186 = vmatprep.subr.mxu0 0.0
    %187 = vmatpush1.msra.mxu0 %v158
    %188 = vmatprep.subr.mxu0 0.0
    %189 = vmatpush1.msra.mxu0 %v157
    %190 = vmatprep.subr.mxu0 0.0
    %191 = vmatpush1.msra.mxu0 %v156
    %192 = vmatprep.subr.mxu0 0.0
    %193 = vmatpush1.msra.mxu0 %v155
    %194 = vmatprep.subr.mxu0 0.0
    %195 = vmatpush1.msra.mxu0 %v154
    %196 = vmatprep.subr.mxu0 0.0
    %197 = vmatpush1.msra.mxu0 %v153
    %198 = vmatprep.subr.mxu0 0.0
    %199 = vmatpush1.msra.mxu0 %v152
    %200 = vmatprep.subr.mxu0 0.0
    %201 = vmatpush2.msra.mxu0 0.0
    %202 = vmatprep.subr.mxu0 0.0
    %203 = vmatpush2.msra.mxu0 0.0
    %204 = vmatprep.subr.mxu0 0.0
    %205 = vmatpush2.msra.mxu0 0.0
    %206 = vmatprep.subr.mxu0 0.0
    %207 = vmatpush2.msra.mxu0 0.0
    %208 = vmatprep.subr.mxu0 0.0
    %209 = vmatpush2.msra.mxu0 0.0
    %210 = vmatprep.subr.mxu0 0.0
    %211 = vmatpush2.msra.mxu0 0.0
    %212 = vmatprep.subr.mxu0 0.0
    %213 = vmatpush2.msra.mxu0 0.0
    %214 = vmatprep.subr.mxu0 0.0
    %215 = vmatpush2.msra.mxu0 0.0
    %216 = vmatprep.subr.mxu0 0.0
    %217 = vmatpush2.msra.mxu0 0.0
    %218 = vmatprep.subr.mxu0 0.0
    %219 = vmatpush2.msra.mxu0 0.0
    %220 = vmatprep.subr.mxu0 0.0
    %221 = vmatpush2.msra.mxu0 0.0
    %222 = vmatprep.subr.mxu0 0.0
    %223 = vmatpush2.msra.mxu0 0.0
    %224 = vmatprep.subr.mxu0 0.0
    %225 = vmatpush2.msra.mxu0 0.0
    %226 = vmatprep.subr.mxu0 0.0
    %227 = vmatpush2.msra.mxu0 0.0
    %228 = vmatprep.subr.mxu0 0.0
    %229 = vmatpush2.msra.mxu0 0.0
    %230 = vmatprep.subr.mxu0 0.0
    %231 = vmatpush2.msra.mxu0 0.0
    %232 = vmatprep.mubr.f32.mxu0 0.0
    %233 = vmatmul.mubr.f32.gmra.mxu0 %v151
    %v234 = vpop.f32.mrf.mxu0
    %v235 = vadd.f32 0.0, %v234
    %v236 = vpop.f32.mrf.mxu0
    %237 = vdwg.mxu0
    %v238 = vlaneseq
    %v239 = vand.u32 %v238, 127
    %vm240 = vcmp.lt.s32.totalorder %v239, 4
    %v241 = vsel %vm240, %v235, -inf
    %242 = vmax.xlane.f32.xlu0 %v241
    %v243 = vpop.xlane.xlu0 %242
    %v244 = vsub.f32 %v241, %v243
    %v245 = vmul.f32 %v244, 1.442695
    %v246 = vpow.pop %v245
    %247 = vadd.xlane.f32.xlu0 %v246
    %v248 = vpop.xlane.xlu0 %247
    %v249 = vrcp.pop %v248
    %v250 = vmul.f32 %v246, %v249
    %251 = vst [vmem:[#allocation10] sm:$0xff] %v250
    // Predicated region
    $region34: #{tpu_custom_call.1} parent=1 // pred_check
      _
    $region35: #{tpu_custom_call.1} parent=1 // pred_check_branch
      %253 = sbr.rel (0) target = $region37
    $region36: #{tpu_custom_call.1} parent=1 // pred_region
      %s255 = ssub.s32 128, 128
      %256 = vsyncadd [#allocation4], %s255
      %s258 = sshll.u32 [#allocation10], 4
      %s259 = int_to_ptr.vmem [resolvable:$true] %s258
      %261 = dma.vmem_to_hbm [thread:$0]  %s259, 128, %s4, [#allocation4]
    $region37: #{tpu_custom_call.1} parent=1 // pred_fallthru
      _
    // Predicated region
    $region38: #{tpu_custom_call.1} parent=1 // pred_check
      _
    $region39: #{tpu_custom_call.1} parent=1 // pred_check_branch
      %263 = sbr.rel (0) target = $region41
    $region40: #{tpu_custom_call.1} parent=1 // pred_region
      %264 = dma.done [#allocation4], 128
    $region41: #{tpu_custom_call.1} parent=1 // pred_fallthru
      _
    %265 = vsyncpa [#allocation3], 1
    %266 = vsyncpa [#allocation6], 1
    %267 = vsyncpa [#allocation9], 1
    %268 = vsyncpa [#allocation4], 1

</llo_original>
